<compile_context>
chip_gen: v6e
topology: v6e:2x2x1
jax: 0.10.0
libtpu: 0.0.40
codegen_flags: <defaults>
</compile_context>

<pallas_src>
import jax
import jax.numpy as jnp
from jax.experimental import pallas as pl
from jax.experimental.pallas import tpu as pltpu


def _round_up(x, m):
    return -(-x // m) * m


def _num_tensorcores():
    """Best-effort TC-per-chip count: 2 on v7x/v4-class megacore parts, else 1."""
    try:
        kind = jax.devices()[0].device_kind.lower()
    except Exception:
        return 1
    return 2 if ("v7" in kind or "v4" in kind) else 1


def _fuser_kernel(img_ref, rot_ref, w1a_ref, w1b_ref, b1_ref, w2_ref, b2_ref,
                  out_ref):
    cdt = w1a_ref.dtype
    # Layer 1 on the (virtually) concatenated input: concat([a,b])@W1 == a@W1a + b@W1b.
    # Activations arrive as f32 and are cast to the MXU compute dtype on the VPU here
    # (cheap (tile,32)/(tile,24) casts; avoids a separate wrapper-side astype pass).
    h = jnp.dot(img_ref[...].astype(cdt), w1a_ref[...],
                preferred_element_type=jnp.float32)
    h = h + jnp.dot(rot_ref[...].astype(cdt), w1b_ref[...],
                    preferred_element_type=jnp.float32)
    # Bias + ReLU in f32 (MXU accumulator is already f32; v5e VPU has no bf16 path).
    h = jnp.maximum(h + b1_ref[...], 0.0)
    # Layer 2: cast the activation to the MXU compute dtype right before the dot.
    out = jnp.dot(h.astype(w2_ref.dtype), w2_ref[...],
                  preferred_element_type=jnp.float32)
    out_ref[...] = (out + b2_ref[...]).astype(out_ref.dtype)


def image_feat_fuser(img_feat, rotatable_feat, params, *, row_tile=4096,
                     compute_dtype=jnp.bfloat16, out_dtype=jnp.float32):
    """img_feat: (..., D_img); rotatable_feat: (..., F, 3). Returns (..., 3F) out_dtype."""
    w1a, w1b, b1, w2, b2 = (params["w1a"], params["w1b"], params["b1"],
                            params["w2"], params["b2"])
    d_img = img_feat.shape[-1]
    d_rot = rotatable_feat.shape[-2] * rotatable_feat.shape[-1]
    lead = img_feat.shape[:-1]

    # Activations stay f32 at the pallas_call boundary; cast happens in-kernel.
    img2d = img_feat.reshape(-1, d_img).astype(jnp.float32)
    rot2d = rotatable_feat.reshape(-1, d_rot).astype(jnp.float32)
    n = img2d.shape[0]

    c_hid = d_img + d_rot           # MLP hidden dim (== in_channel)
    c_out = d_rot                   # MLP output dim (3F) — NOT padded
    # Hidden dim padded to 128 in the (tiny) weights only: layer-2 K becomes
    # MXU-friendly and the intermediate h never touches HBM. Padded hidden lanes are
    # exactly zero (zero-padded b1 + ReLU), so zero-padded w2 rows contribute nothing.
    c_hid_p = _round_up(c_hid, 128)
    cdt = jnp.dtype(compute_dtype)

    w1a_p = jnp.zeros((d_img, c_hid_p), cdt).at[:, :c_hid].set(w1a.astype(cdt))
    w1b_p = jnp.zeros((d_rot, c_hid_p), cdt).at[:, :c_hid].set(w1b.astype(cdt))
    b1_p = jnp.zeros((1, c_hid_p), jnp.float32).at[:, :c_hid].set(
        b1.reshape(1, c_hid).astype(jnp.float32))
    w2_p = jnp.zeros((c_hid_p, c_out), cdt).at[:c_hid, :].set(w2.astype(cdt))
    b2_p = b2.reshape(1, c_out).astype(jnp.float32)

    # Row tiling. All boundary arrays are f32 -> sublane quantum is 8. A full-dim
    # block (tile == n) is always legal regardless of divisibility; a partial tile
    # must be a multiple of 8 (Pallas masks the non-divisible tail).
    sub = 8
    n_tc = _num_tensorcores()
    tile = min(row_tile, n)
    if tile < n:
        tile = _round_up(tile, sub)
    if n_tc >= 2 and n > 2 * sub:
        # Keep >= 2 grid steps so both TensorCores on megacore parts get shards.
        half = _round_up(pl.cdiv(n, 2), sub)
        tile = min(tile, half)
    tile = max(tile, min(n, sub))
    grid = (pl.cdiv(n, tile),)                     # uneven tail handled by Pallas

    out_itemsize = jnp.dtype(out_dtype).itemsize
    flops = int(2 * n * (d_img + d_rot) * c_hid_p + 2 * n * c_hid_p * c_out)
    bytes_accessed = int(
        n * (d_img + d_rot) * 4                                  # f32 activations in
        + n * c_out * out_itemsize                               # unpadded output
        + (w1a_p.size + w1b_p.size + w2_p.size) * cdt.itemsize   # weights
        + (b1_p.size + b2_p.size) * 4)                           # biases (f32)

    out = pl.pallas_call(
        _fuser_kernel,
        out_shape=jax.ShapeDtypeStruct((n, c_out), out_dtype),
        grid_spec=pltpu.PrefetchScalarGridSpec(
            num_scalar_prefetch=0,
            grid=grid,
            in_specs=[
                pl.BlockSpec((tile, d_img), lambda i: (i, 0)),      # img rows (f32, streamed)
                pl.BlockSpec((tile, d_rot), lambda i: (i, 0)),      # rot rows (f32, streamed)
                pl.BlockSpec((d_img, c_hid_p), lambda i: (0, 0)),   # W1 (top rows)
                pl.BlockSpec((d_rot, c_hid_p), lambda i: (0, 0)),   # W1 (bottom rows)
                pl.BlockSpec((1, c_hid_p), lambda i: (0, 0)),       # b1 (f32)
                pl.BlockSpec((c_hid_p, c_out), lambda i: (0, 0)),   # W2 (unpadded out dim)
                pl.BlockSpec((1, c_out), lambda i: (0, 0)),         # b2 (f32)
            ],
            out_specs=pl.BlockSpec((tile, c_out), lambda i: (i, 0)),
        ),
        compiler_params=pltpu.CompilerParams(
            dimension_semantics=("parallel",)),
        cost_estimate=pl.CostEstimate(flops=flops, transcendentals=0,
                                      bytes_accessed=bytes_accessed),
    )(img2d, rot2d, w1a_p, w1b_p, b1_p, w2_p, b2_p)

    return out.reshape(*lead, c_out)


def init_params(img_feat_dim, num_feat_vec, key):
    """Deterministic synthetic init matching the PyTorch layer shapes.

    Weights are stored as (in, out) for x @ W; a real nn.Linear checkpoint must be
    transposed (and W1 split at row img_feat_dim) before use.
    """
    c_in = img_feat_dim + num_feat_vec * 3
    c_out = num_feat_vec * 3
    k1, k2, k3, k4 = jax.random.split(key, 4)
    w1 = jax.random.normal(k1, (c_in, c_in), jnp.float32) * 0.05
    b1 = jax.random.normal(k2, (1, c_in), jnp.float32) * 0.05
    w2 = jax.random.normal(k3, (c_in, c_out), jnp.float32) * 0.05
    b2 = jax.random.normal(k4, (1, c_out), jnp.float32) * 0.05
    return {
        "w1a": w1[:img_feat_dim],   # rows multiplied by img_feat
        "w1b": w1[img_feat_dim:],   # rows multiplied by flattened rotatable_feat
        "b1": b1,
        "w2": w2,
        "b2": b2,
    }


def reference(img_feat, rotatable_feat, params):
    """Pure-JAX f32 reference of the PyTorch forward (concat -> Linear -> ReLU -> Linear)."""
    w1 = jnp.concatenate([params["w1a"], params["w1b"]], axis=0)
    x = jnp.concatenate(
        [img_feat, rotatable_feat.reshape(*rotatable_feat.shape[:-2], -1)], axis=-1)
    h = jnp.maximum(x @ w1 + params["b1"][0], 0.0)
    return h @ params["w2"] + params["b2"][0]


if __name__ == "__main__":
    # Small, module-consistent shapes: batch=2, seq=8, img_feat_dim=32, num_feat_vec=8.
    B, S = 2, 8
    img_feat_dim = 32
    num_feat_vec = 8

    key = jax.random.PRNGKey(0)
    kp, ki, kr = jax.random.split(key, 3)

    params = init_params(img_feat_dim, num_feat_vec, kp)
    img_feat = jax.random.normal(ki, (B, S, img_feat_dim), jnp.float32)
    rotatable_feat = jax.random.normal(kr, (B, S, num_feat_vec, 3), jnp.float32)

    ref = reference(img_feat, rotatable_feat, params)

    # Default path: bf16 MXU operands, f32 accumulation/epilogue, f32 output.
    out_bf16 = jax.block_until_ready(image_feat_fuser(img_feat, rotatable_feat, params))
    # Exact f32 path (tight correctness check of the kernel structure).
    out_f32 = jax.block_until_ready(
        image_feat_fuser(img_feat, rotatable_feat, params, compute_dtype=jnp.float32))

    assert out_bf16.shape == (B, S, num_feat_vec * 3), out_bf16.shape
    assert out_f32.shape == (B, S, num_feat_vec * 3), out_f32.shape
    assert jnp.allclose(out_f32, ref, atol=1e-4, rtol=1e-4), "f32 kernel mismatch vs reference"
    assert jnp.allclose(out_bf16, ref, atol=2e-2, rtol=2e-2), "bf16 kernel mismatch vs reference"

    # Second, non-divisible row count to exercise the masked tail-tile path.
    B2, S2 = 3, 70                       # n = 210 rows (not a multiple of the tile)
    ki2, kr2 = jax.random.split(jax.random.PRNGKey(1), 2)
    img2 = jax.random.normal(ki2, (B2, S2, img_feat_dim), jnp.float32)
    rot2 = jax.random.normal(kr2, (B2, S2, num_feat_vec, 3), jnp.float32)
    ref2 = reference(img2, rot2, params)
    out2 = jax.block_until_ready(
        image_feat_fuser(img2, rot2, params, compute_dtype=jnp.float32))
    assert out2.shape == (B2, S2, num_feat_vec * 3), out2.shape
    assert jnp.allclose(out2, ref2, atol=1e-4, rtol=1e-4), "tail-tile kernel mismatch"

    print("KERNEL_OK")
</pallas_src>

<mosaic_0001>
module attributes {stable_mosaic.version = 11 : i64} {
  func.func @_fuser_kernel(%arg0: i32, %arg1: memref<16x32xf32, #tpu.memory_space<vmem>>, %arg2: memref<16x24xf32, #tpu.memory_space<vmem>>, %arg3: memref<32x128xbf16, #tpu.memory_space<vmem>>, %arg4: memref<24x128xbf16, #tpu.memory_space<vmem>>, %arg5: memref<1x128xf32, #tpu.memory_space<vmem>>, %arg6: memref<128x24xbf16, #tpu.memory_space<vmem>>, %arg7: memref<1x24xf32, #tpu.memory_space<vmem>>, %arg8: memref<16x24xf32, #tpu.memory_space<vmem>>) attributes {dimension_semantics = [#tpu.dimension_semantics<parallel>], iteration_bounds = array<i64: 1>, scalar_prefetch = 0 : i64, scratch_operands = 0 : i64, tpu.core_type = #tpu.core_type<tc>, window_params = [{transform_indices = @transform_0, window_bounds = array<i64: 16, 32>}, {transform_indices = @transform_1, window_bounds = array<i64: 16, 24>}, {pipeline_mode = #tpu.pipeline_mode<synchronous>, transform_indices = @transform_2, window_bounds = array<i64: 32, 128>}, {pipeline_mode = #tpu.pipeline_mode<synchronous>, transform_indices = @transform_3, window_bounds = array<i64: 24, 128>}, {pipeline_mode = #tpu.pipeline_mode<synchronous>, transform_indices = @transform_4, window_bounds = array<i64: 1, 128>}, {pipeline_mode = #tpu.pipeline_mode<synchronous>, transform_indices = @transform_5, window_bounds = array<i64: 128, 24>}, {pipeline_mode = #tpu.pipeline_mode<synchronous>, transform_indices = @transform_6, window_bounds = array<i64: 1, 24>}, {transform_indices = @transform_7, window_bounds = array<i64: 16, 24>}]} {
    %c0 = arith.constant 0 : index
    %c0_0 = arith.constant 0 : index
    %0 = vector.load %arg1[%c0, %c0_0] : memref<16x32xf32, #tpu.memory_space<vmem>>, vector<16x32xf32>
    %1 = arith.truncf %0 : vector<16x32xf32> to vector<16x32xbf16>
    %c0_1 = arith.constant 0 : index
    %c0_2 = arith.constant 0 : index
    %2 = vector.load %arg3[%c0_1, %c0_2] : memref<32x128xbf16, #tpu.memory_space<vmem>>, vector<32x128xbf16>
    %cst = arith.constant dense<0.000000e+00> : vector<16x128xf32>
    %3 = tpu.matmul %1, %2, %cst {dimension_numbers = #tpu.dot_dimension_numbers<[1], [0], [0], [1], [0, 0, 1, 1], [], []>} : vector<16x32xbf16>, vector<32x128xbf16>, vector<16x128xf32> -> vector<16x128xf32>
    %c0_3 = arith.constant 0 : index
    %c0_4 = arith.constant 0 : index
    %4 = vector.load %arg2[%c0_3, %c0_4] : memref<16x24xf32, #tpu.memory_space<vmem>>, vector<16x24xf32>
    %5 = arith.truncf %4 : vector<16x24xf32> to vector<16x24xbf16>
    %c0_5 = arith.constant 0 : index
    %c0_6 = arith.constant 0 : index
    %6 = vector.load %arg4[%c0_5, %c0_6] : memref<24x128xbf16, #tpu.memory_space<vmem>>, vector<24x128xbf16>
    %cst_7 = arith.constant dense<0.000000e+00> : vector<16x128xf32>
    %7 = tpu.matmul %5, %6, %cst_7 {dimension_numbers = #tpu.dot_dimension_numbers<[1], [0], [0], [1], [0, 0, 1, 1], [], []>} : vector<16x24xbf16>, vector<24x128xbf16>, vector<16x128xf32> -> vector<16x128xf32>
    %8 = arith.addf %3, %7 : vector<16x128xf32>
    %c0_8 = arith.constant 0 : index
    %c0_9 = arith.constant 0 : index
    %9 = vector.load %arg5[%c0_8, %c0_9] : memref<1x128xf32, #tpu.memory_space<vmem>>, vector<1x128xf32>
    %10 = vector.broadcast %9 : vector<1x128xf32> to vector<16x128xf32>
    %11 = arith.addf %8, %10 : vector<16x128xf32>
    %cst_10 = arith.constant 0.000000e+00 : f32
    %12 = vector.broadcast %cst_10 : f32 to vector<16x128xf32>
    %13 = arith.maximumf %11, %12 : vector<16x128xf32>
    %14 = arith.truncf %13 : vector<16x128xf32> to vector<16x128xbf16>
    %c0_11 = arith.constant 0 : index
    %c0_12 = arith.constant 0 : index
    %15 = vector.load %arg6[%c0_11, %c0_12] : memref<128x24xbf16, #tpu.memory_space<vmem>>, vector<128x24xbf16>
    %cst_13 = arith.constant dense<0.000000e+00> : vector<16x24xf32>
    %16 = tpu.matmul %14, %15, %cst_13 {dimension_numbers = #tpu.dot_dimension_numbers<[1], [0], [0], [1], [0, 0, 1, 1], [], []>} : vector<16x128xbf16>, vector<128x24xbf16>, vector<16x24xf32> -> vector<16x24xf32>
    %c0_14 = arith.constant 0 : index
    %c0_15 = arith.constant 0 : index
    %17 = vector.load %arg7[%c0_14, %c0_15] : memref<1x24xf32, #tpu.memory_space<vmem>>, vector<1x24xf32>
    %18 = vector.broadcast %17 : vector<1x24xf32> to vector<16x24xf32>
    %19 = arith.addf %16, %18 : vector<16x24xf32>
    %c0_16 = arith.constant 0 : index
    %c0_17 = arith.constant 0 : index
    %20 = vector.load %arg8[%c0_16, %c0_17] : memref<16x24xf32, #tpu.memory_space<vmem>>, vector<16x24xf32>
    tpu.vector_store %arg8[%c0_16, %c0_17], %19 {strides = array<i32>} : memref<16x24xf32, #tpu.memory_space<vmem>>, vector<16x24xf32>,
    return
  }
  func.func @transform_0(%arg0: i32) -> (i32, i32) {
    %c0_i32 = arith.constant 0 : i32
    %c0_i32_0 = arith.constant 0 : i32
    return %arg0, %c0_i32 : i32, i32
  }
  func.func @transform_1(%arg0: i32) -> (i32, i32) {
    %c0_i32 = arith.constant 0 : i32
    %c0_i32_0 = arith.constant 0 : i32
    return %arg0, %c0_i32 : i32, i32
  }
  func.func @transform_2(%arg0: i32) -> (i32, i32) {
    %c0_i32 = arith.constant 0 : i32
    %c0_i32_0 = arith.constant 0 : i32
    %c0_i32_1 = arith.constant 0 : i32
    return %c0_i32, %c0_i32_0 : i32, i32
  }
  func.func @transform_3(%arg0: i32) -> (i32, i32) {
    %c0_i32 = arith.constant 0 : i32
    %c0_i32_0 = arith.constant 0 : i32
    %c0_i32_1 = arith.constant 0 : i32
    return %c0_i32, %c0_i32_0 : i32, i32
  }
  func.func @transform_4(%arg0: i32) -> (i32, i32) {
    %c0_i32 = arith.constant 0 : i32
    %c0_i32_0 = arith.constant 0 : i32
    %c0_i32_1 = arith.constant 0 : i32
    return %c0_i32, %c0_i32_0 : i32, i32
  }
  func.func @transform_5(%arg0: i32) -> (i32, i32) {
    %c0_i32 = arith.constant 0 : i32
    %c0_i32_0 = arith.constant 0 : i32
    %c0_i32_1 = arith.constant 0 : i32
    return %c0_i32, %c0_i32_0 : i32, i32
  }
  func.func @transform_6(%arg0: i32) -> (i32, i32) {
    %c0_i32 = arith.constant 0 : i32
    %c0_i32_0 = arith.constant 0 : i32
    %c0_i32_1 = arith.constant 0 : i32
    return %c0_i32, %c0_i32_0 : i32, i32
  }
  func.func @transform_7(%arg0: i32) -> (i32, i32) {
    %c0_i32 = arith.constant 0 : i32
    %c0_i32_0 = arith.constant 0 : i32
    return %arg0, %c0_i32 : i32, i32
  }
}

</mosaic_0001>

<llo_original>
// kernel: tpu_custom_call.1
$region0: #{tpu_custom_call.1}
  #allocation0 [shape = 'u32[]', space=smem, size = 0x4, offset = 0x4, fixed_abs, tag = 'smem constant byte address 0x4 - core index']
  #allocation1 [shape = 'u32[144,128]{1,0:T(1,128)}', space=vmem, size = 0x12000, scoped, tag = 'internal scratch']
  %s0 = inlined_call_operand.vmem [shape: f32[16,32], index: 0, kind: input, shape index: {}]
  %s1 = inlined_call_operand.vmem [shape: f32[16,24], index: 1, kind: input, shape index: {}]
  %s2 = inlined_call_operand.vmem [shape: bf16[32,128], index: 2, kind: input, shape index: {}]
  %s3 = inlined_call_operand.vmem [shape: bf16[24,128], index: 3, kind: input, shape index: {}]
  %s4 = inlined_call_operand.vmem [shape: f32[1,128], index: 4, kind: input, shape index: {}]
  %s5 = inlined_call_operand.vmem [shape: bf16[128,24], index: 5, kind: input, shape index: {}]
  %s6 = inlined_call_operand.vmem [shape: f32[1,24], index: 6, kind: input, shape index: {}]
  %s7 = inlined_call_operand.hbm [shape: f32[16,24], index: 7, kind: output, shape index: {}]
  %s8 = sld [smem:[#allocation0]]
  $region38: #{tpu_custom_call.1} parent=0
    _
  %s10 = ssub.s32 1, %s8
  %s11 = scalar_select 0, %s10, %s8
  $region1: #{tpu_custom_call.1} parent=0
    #allocation2 [shape = 'u8[8192]{0}', space=vmem, size = 0x2000, scoped, tag = 'output window, operand 0, single buffered']
    #allocation3 [shape = 's32[1]{0}', space=sflag, size = 0x4, scoped, tag = 'scoped memory for tpu_custom_call.1']
    %12 = vsyncpa [#allocation3], 0
    // Predicated region
    $region2: #{tpu_custom_call.1} parent=1 // pred_check
      _
    $region3: #{tpu_custom_call.1} parent=1 // pred_check_branch
      %14 = sbr.rel (0) target = $region5
    $region4: #{tpu_custom_call.1} parent=1 // pred_region
      _
    $region5: #{tpu_custom_call.1} parent=1 // pred_fallthru
      _
    // Predicated region
    $region6: #{tpu_custom_call.1} parent=1 // pred_check
      _
    $region7: #{tpu_custom_call.1} parent=1 // pred_check_branch
      %16 = sbr.rel (0) target = $region9
    $region8: #{tpu_custom_call.1} parent=1 // pred_region
      _
    $region9: #{tpu_custom_call.1} parent=1 // pred_fallthru
      _
    // Predicated region
    $region10: #{tpu_custom_call.1} parent=1 // pred_check
      _
    $region11: #{tpu_custom_call.1} parent=1 // pred_check_branch
      %18 = sbr.rel (0) target = $region13
    $region12: #{tpu_custom_call.1} parent=1 // pred_region
      _
    $region13: #{tpu_custom_call.1} parent=1 // pred_fallthru
      _
    // Predicated region
    $region14: #{tpu_custom_call.1} parent=1 // pred_check
      _
    $region15: #{tpu_custom_call.1} parent=1 // pred_check_branch
      %20 = sbr.rel (0) target = $region17
    $region16: #{tpu_custom_call.1} parent=1 // pred_region
      _
    $region17: #{tpu_custom_call.1} parent=1 // pred_fallthru
      _
    // Predicated region
    $region18: #{tpu_custom_call.1} parent=1 // pred_check
      _
    $region19: #{tpu_custom_call.1} parent=1 // pred_check_branch
      %22 = sbr.rel (0) target = $region21
    $region20: #{tpu_custom_call.1} parent=1 // pred_region
      _
    $region21: #{tpu_custom_call.1} parent=1 // pred_fallthru
      _
    // Predicated region
    $region22: #{tpu_custom_call.1} parent=1 // pred_check
      _
    $region23: #{tpu_custom_call.1} parent=1 // pred_check_branch
      %24 = sbr.rel (0) target = $region25
    $region24: #{tpu_custom_call.1} parent=1 // pred_region
      _
    $region25: #{tpu_custom_call.1} parent=1 // pred_fallthru
      _
    // Predicated region
    $region26: #{tpu_custom_call.1} parent=1 // pred_check
      _
    $region27: #{tpu_custom_call.1} parent=1 // pred_check_branch
      %26 = sbr.rel (0) target = $region29
    $region28: #{tpu_custom_call.1} parent=1 // pred_region
      _
    $region29: #{tpu_custom_call.1} parent=1 // pred_fallthru
      _
    %v28 = vld [vmem:[%s0] sm:$0xff]
    %v29 = vld [vmem:[%s0 + $0x8] sm:$0xff]
    %v30 = vpack.c.bf16 %v29, %v28
    %v31 = vld [vmem:[%s2] sm:$0xf]
    %v32 = vld [vmem:[%s2 + $0x4] sm:$0xf]
    %v33 = vld [vmem:[%s2 + $0x8] sm:$0xf]
    %v34 = vld [vmem:[%s2 + $0xc] sm:$0xf]
    %v35 = vld [vmem:[%s1] sm:$0xff]
    %v36 = vld [vmem:[%s1 + $0x8] sm:$0xff]
    %v37 = vpack.c.bf16 %v36, %v35
    %v38 = vld [vmem:[%s3] sm:$0xf]
    %v39 = vld [vmem:[%s3 + $0x4] sm:$0xf]
    %v40 = vld [vmem:[%s3 + $0x8] sm:$0xf]
    %v44 = vunpack.c.l.b16 %v38
    %v45 = vunpack.c.l.b16 %v39
    %v46 = vunpack.c.l.b16 %v40
    %v47 = vpack.c.b16 %v45, %v44
    %v48 = vpack.c.b16 %v46, %v46
    %vm50 = vcmask 195584
    %v52 = vsel %vm50, %v37, 0
    %vm54 = vcmask 1043456
    %v56 = vsel %vm54, %v48, 0
    %58 = vmatprep.subr.bf16.mxu0 0
    %59 = vmatpush1.bf16.msra.mxu0 0
    %60 = vmatprep.subr.bf16.mxu0 0
    %61 = vmatpush1.bf16.msra.mxu0 0
    %62 = vmatprep.subr.bf16.mxu0 0
    %63 = vmatpush1.bf16.msra.mxu0 0
    %64 = vmatprep.subr.bf16.mxu0 0
    %65 = vmatpush1.bf16.msra.mxu0 0
    %66 = vmatprep.subr.bf16.mxu0 0
    %67 = vmatpush1.bf16.msra.mxu0 0
    %68 = vmatprep.subr.bf16.mxu0 0
    %69 = vmatpush1.bf16.msra.mxu0 0
    %70 = vmatprep.subr.bf16.mxu0 0
    %71 = vmatpush1.bf16.msra.mxu0 %v56
    %72 = vmatprep.subr.bf16.mxu0 0
    %73 = vmatpush1.bf16.msra.mxu0 %v47
    %74 = vmatprep.subr.bf16.mxu0 0
    %75 = vmatpush2.bf16.msra.mxu0 0
    %76 = vmatprep.subr.bf16.mxu0 0
    %77 = vmatpush2.bf16.msra.mxu0 0
    %78 = vmatprep.subr.bf16.mxu0 0
    %79 = vmatpush2.bf16.msra.mxu0 0
    %80 = vmatprep.subr.bf16.mxu0 0
    %81 = vmatpush2.bf16.msra.mxu0 0
    %82 = vmatprep.subr.bf16.mxu0 0
    %83 = vmatpush2.bf16.msra.mxu0 0
    %84 = vmatprep.subr.bf16.mxu0 0
    %85 = vmatpush2.bf16.msra.mxu0 0
    %86 = vmatprep.subr.bf16.mxu0 0
    %87 = vmatpush2.bf16.msra.mxu0 0
    %88 = vmatprep.subr.bf16.mxu0 0
    %89 = vmatpush2.bf16.msra.mxu0 0
    %90 = vmatprep.mubr.bf16.mxu0 0
    %91 = vmatmul.mubr.bf16.gmra.mxu0 %v52
    %v92 = vpop.f32.mrf.mxu0
    %v93 = vadd.f32 0.0, %v92
    %v94 = vpop.f32.mrf.mxu0
    %v95 = vpop.f32.mrf.mxu0
    %v96 = vadd.f32 0.0, %v95
    %v97 = vpop.f32.mrf.mxu0
    %98 = vdwg.mxu0
    %v103 = vunpack.c.l.b16 %v31
    %v104 = vunpack.c.l.b16 %v32
    %v105 = vunpack.c.l.b16 %v33
    %v106 = vunpack.c.l.b16 %v34
    %v107 = vpack.c.b16 %v104, %v103
    %v108 = vpack.c.b16 %v106, %v105
    %vm111 = vcmask 261120
    %v113 = vsel %vm111, %v30, 0
    %115 = vmatprep.subr.bf16.mxu0 0
    %116 = vmatpush1.bf16.msra.mxu0 0
    %117 = vmatprep.subr.bf16.mxu0 0
    %118 = vmatpush1.bf16.msra.mxu0 0
    %119 = vmatprep.subr.bf16.mxu0 0
    %120 = vmatpush1.bf16.msra.mxu0 0
    %121 = vmatprep.subr.bf16.mxu0 0
    %122 = vmatpush1.bf16.msra.mxu0 0
    %123 = vmatprep.subr.bf16.mxu0 0
    %124 = vmatpush1.bf16.msra.mxu0 0
    %125 = vmatprep.subr.bf16.mxu0 0
    %126 = vmatpush1.bf16.msra.mxu0 0
    %127 = vmatprep.subr.bf16.mxu0 0
    %128 = vmatpush1.bf16.msra.mxu0 %v108
    %129 = vmatprep.subr.bf16.mxu0 0
    %130 = vmatpush1.bf16.msra.mxu0 %v107
    %131 = vmatprep.subr.bf16.mxu0 0
    %132 = vmatpush2.bf16.msra.mxu0 0
    %133 = vmatprep.subr.bf16.mxu0 0
    %134 = vmatpush2.bf16.msra.mxu0 0
    %135 = vmatprep.subr.bf16.mxu0 0
    %136 = vmatpush2.bf16.msra.mxu0 0
    %137 = vmatprep.subr.bf16.mxu0 0
    %138 = vmatpush2.bf16.msra.mxu0 0
    %139 = vmatprep.subr.bf16.mxu0 0
    %140 = vmatpush2.bf16.msra.mxu0 0
    %141 = vmatprep.subr.bf16.mxu0 0
    %142 = vmatpush2.bf16.msra.mxu0 0
    %143 = vmatprep.subr.bf16.mxu0 0
    %144 = vmatpush2.bf16.msra.mxu0 0
    %145 = vmatprep.subr.bf16.mxu0 0
    %146 = vmatpush2.bf16.msra.mxu0 0
    %147 = vmatprep.mubr.bf16.mxu0 0
    %148 = vmatmul.mubr.bf16.gmra.mxu0 %v113
    %v149 = vpop.f32.mrf.mxu0
    %v150 = vadd.f32 %v93, %v149
    %v151 = vpop.f32.mrf.mxu0
    %v152 = vpop.f32.mrf.mxu0
    %v153 = vadd.f32 %v96, %v152
    %v154 = vpop.f32.mrf.mxu0
    %155 = vdwg.mxu0
    %v156 = vld [vmem:[%s4] sm:$0x1]
    %v158 = vlaneseq
    %v159 = vshrl.u32 %v158, 7
    %v160 = vsub.s32 0, %v159
    %v161 = vrot.slane %v156, %v160
    %v163 = vadd.f32 %v150, %v161
    %v164 = vadd.f32 %v153, %v161
    %v165 = vmax.f32 %v163, 0.0
    %v166 = vmax.f32 %v164, 0.0
    %v167 = vpack.c.bf16 %v166, %v165
    %v168 = vld [vmem:[%s5] sm:$0xf]
    %v169 = vld [vmem:[%s5 + $0x4] sm:$0xf]
    %v170 = vld [vmem:[%s5 + $0x8] sm:$0xf]
    %v171 = vld [vmem:[%s5 + $0xc] sm:$0xf]
    %v172 = vld [vmem:[%s5 + $0x10] sm:$0xf]
    %v173 = vld [vmem:[%s5 + $0x14] sm:$0xf]
    %v174 = vld [vmem:[%s5 + $0x18] sm:$0xf]
    %v175 = vld [vmem:[%s5 + $0x1c] sm:$0xf]
    %v176 = vld [vmem:[%s5 + $0x20] sm:$0xf]
    %v177 = vld [vmem:[%s5 + $0x24] sm:$0xf]
    %v178 = vld [vmem:[%s5 + $0x28] sm:$0xf]
    %v179 = vld [vmem:[%s5 + $0x2c] sm:$0xf]
    %v180 = vld [vmem:[%s5 + $0x30] sm:$0xf]
    %v181 = vld [vmem:[%s5 + $0x34] sm:$0xf]
    %v182 = vld [vmem:[%s5 + $0x38] sm:$0xf]
    %v183 = vld [vmem:[%s5 + $0x3c] sm:$0xf]
    %v184 = vld [vmem:[%s6] sm:$0x1]
    %v186 = vlaneseq
    %v187 = vshrl.u32 %v186, 7
    %v188 = vsub.s32 0, %v187
    %v189 = vrot.slane %v184, %v188
    %v207 = vunpack.c.l.b16 %v168
    %v208 = vunpack.c.l.b16 %v169
    %v209 = vunpack.c.l.b16 %v170
    %v210 = vunpack.c.l.b16 %v171
    %v211 = vunpack.c.l.b16 %v172
    %v212 = vunpack.c.l.b16 %v173
    %v213 = vunpack.c.l.b16 %v174
    %v214 = vunpack.c.l.b16 %v175
    %v215 = vunpack.c.l.b16 %v176
    %v216 = vunpack.c.l.b16 %v177
    %v217 = vunpack.c.l.b16 %v178
    %v218 = vunpack.c.l.b16 %v179
    %v219 = vunpack.c.l.b16 %v180
    %v220 = vunpack.c.l.b16 %v181
    %v221 = vunpack.c.l.b16 %v182
    %v222 = vunpack.c.l.b16 %v183
    %v223 = vpack.c.b16 %v208, %v207
    %v224 = vpack.c.b16 %v210, %v209
    %v225 = vpack.c.b16 %v212, %v211
    %v226 = vpack.c.b16 %v214, %v213
    %v227 = vpack.c.b16 %v216, %v215
    %v228 = vpack.c.b16 %v218, %v217
    %v229 = vpack.c.b16 %v220, %v219
    %v230 = vpack.c.b16 %v222, %v221
    %239 = vmatprep.subr.bf16.mxu0 0
    %240 = vmatpush1.bf16.msra.mxu0 %v230
    %241 = vmatprep.subr.bf16.mxu0 0
    %242 = vmatpush1.bf16.msra.mxu0 %v229
    %243 = vmatprep.subr.bf16.mxu0 0
    %244 = vmatpush1.bf16.msra.mxu0 %v228
    %245 = vmatprep.subr.bf16.mxu0 0
    %246 = vmatpush1.bf16.msra.mxu0 %v227
    %247 = vmatprep.subr.bf16.mxu0 0
    %248 = vmatpush1.bf16.msra.mxu0 %v226
    %249 = vmatprep.subr.bf16.mxu0 0
    %250 = vmatpush1.bf16.msra.mxu0 %v225
    %251 = vmatprep.subr.bf16.mxu0 0
    %252 = vmatpush1.bf16.msra.mxu0 %v224
    %253 = vmatprep.subr.bf16.mxu0 0
    %254 = vmatpush1.bf16.msra.mxu0 %v223
    %255 = vmatprep.subr.bf16.mxu0 0
    %256 = vmatpush2.bf16.msra.mxu0 0
    %257 = vmatprep.subr.bf16.mxu0 0
    %258 = vmatpush2.bf16.msra.mxu0 0
    %259 = vmatprep.subr.bf16.mxu0 0
    %260 = vmatpush2.bf16.msra.mxu0 0
    %261 = vmatprep.subr.bf16.mxu0 0
    %262 = vmatpush2.bf16.msra.mxu0 0
    %263 = vmatprep.subr.bf16.mxu0 0
    %264 = vmatpush2.bf16.msra.mxu0 0
    %265 = vmatprep.subr.bf16.mxu0 0
    %266 = vmatpush2.bf16.msra.mxu0 0
    %267 = vmatprep.subr.bf16.mxu0 0
    %268 = vmatpush2.bf16.msra.mxu0 0
    %269 = vmatprep.subr.bf16.mxu0 0
    %270 = vmatpush2.bf16.msra.mxu0 0
    %271 = vmatprep.mubr.bf16.mxu0 0
    %272 = vmatmul.mubr.bf16.gmra.mxu0 %v167
    %v273 = vpop.f32.mrf.mxu0
    %v274 = vadd.f32 %v189, %v273
    %v275 = vpop.f32.mrf.mxu0
    %v276 = vpop.f32.mrf.mxu0
    %v277 = vadd.f32 %v189, %v276
    %v278 = vpop.f32.mrf.mxu0
    %279 = vdwg.mxu0
    %280 = vst.msk [vmem:[#allocation2] sm:$0xff] %vm50, %v274
    %281 = vst.msk [vmem:[#allocation2 + $0x8] sm:$0xff] %vm50, %v277
    // Predicated region
    $region30: #{tpu_custom_call.1} parent=1 // pred_check
      _
    $region31: #{tpu_custom_call.1} parent=1 // pred_check_branch
      %283 = sbr.rel (0) target = $region33
    $region32: #{tpu_custom_call.1} parent=1 // pred_region
      %s285 = ssub.s32 256, 256
      %286 = vsyncadd [#allocation3], %s285
      %s287 = sshll.u32 [#allocation2], 4
      %s288 = int_to_ptr.vmem [resolvable:$true] %s287
      %293 = dma.vmem_to_hbm [thread:$0]  %s288, 256, %s7, [#allocation3], 128, 128, 8
    $region33: #{tpu_custom_call.1} parent=1 // pred_fallthru
      _
    // Predicated region
    $region34: #{tpu_custom_call.1} parent=1 // pred_check
      _
    $region35: #{tpu_custom_call.1} parent=1 // pred_check_branch
      %295 = sbr.rel (0) target = $region37
    $region36: #{tpu_custom_call.1} parent=1 // pred_region
      %296 = dma.done [#allocation3], 256
    $region37: #{tpu_custom_call.1} parent=1 // pred_fallthru
      _
    %297 = vsyncpa [#allocation3], 1

</llo_original>
